<compile_context>
chip_gen: v7x
topology: tpu7x:2x2x1
jax: 0.10.0
libtpu: 0.0.40
codegen_flags: <defaults>
</compile_context>

<pallas_src>
import functools

import jax
import jax.numpy as jnp
from jax import lax
from jax.experimental import pallas as pl
from jax.experimental.pallas import tpu as pltpu

_INV_SQRT2 = 0.7071067811865476
_SQRT_2_OVER_PI = 0.7978845608028654


# --------------------------------------------------------------------------- kernels
def _gelu(h, approximate):
    if approximate:
        # tanh approximation: transcendental runs on the EUP slot instead of a VALU erf poly.
        inner = jnp.float32(_SQRT_2_OVER_PI) * (h + jnp.float32(0.044715) * h * h * h)
        return 0.5 * h * (1.0 + jnp.tanh(inner))
    return 0.5 * h * (1.0 + lax.erf(h * jnp.float32(_INV_SQRT2)))


def _ffn_kernel_scratch(x_ref, w1_ref, b1_ref, w2_ref, b2_ref, o_ref, acc_ref,
                        *, approximate):
    """Variant with an f32 VMEM accumulator (used when the output dtype is not f32)."""
    k = pl.program_id(1)

    @pl.when(k == 0)
    def _init():
        # Fold b2 into the accumulator init (saves a full-tile add at finalize).
        acc_ref[...] = jnp.broadcast_to(b2_ref[...].astype(jnp.float32), acc_ref.shape)

    h = jnp.dot(x_ref[...], w1_ref[...], preferred_element_type=jnp.float32)
    h = h + b1_ref[...].astype(jnp.float32)
    h = _gelu(h, approximate)
    acc_ref[...] += jnp.dot(h.astype(w2_ref.dtype), w2_ref[...],
                            preferred_element_type=jnp.float32)

    @pl.when(k == pl.num_programs(1) - 1)
    def _finalize():
        o_ref[...] = acc_ref[...].astype(o_ref.dtype)


def _ffn_kernel_inplace(x_ref, w1_ref, b1_ref, w2_ref, b2_ref, o_ref, *, approximate):
    """f32-output variant: accumulate directly into the resident output block (no scratch)."""
    k = pl.program_id(1)

    @pl.when(k == 0)
    def _init():
        o_ref[...] = jnp.broadcast_to(b2_ref[...].astype(jnp.float32), o_ref.shape)

    h = jnp.dot(x_ref[...], w1_ref[...], preferred_element_type=jnp.float32)
    h = h + b1_ref[...].astype(jnp.float32)
    h = _gelu(h, approximate)
    o_ref[...] += jnp.dot(h.astype(w2_ref.dtype), w2_ref[...],
                          preferred_element_type=jnp.float32)


# --------------------------------------------------------------------------- tiling helpers
def _round_up(x, m):
    return (x + m - 1) // m * m


def _vmem_capacity_bytes():
    try:
        return int(pltpu.get_tpu_info().vmem_capacity_bytes)
    except Exception:
        return 64 << 20   # conservative (v7x-sized) fallback, safe on every generation


def _hidden_tile_candidates(h_total, preferred):
    """Multiples of 128 that divide the hidden dim, descending from `preferred`."""
    top = (min(preferred, h_total) // 128) * 128
    cands = [t for t in range(top, 0, -128) if h_total % t == 0]
    return cands if cands else [h_total]


def _tile_footprint(tm, th, e_pad, xb, wb, b1b, b2b, ob, use_scratch, h_cast_b):
    return (2 * tm * e_pad * xb                         # x tile (double-buffered)
            + 2 * e_pad * th * wb                       # W1 hidden slab (streamed)
            + 2 * th * b1b                              # b1 slab
            + 2 * th * e_pad * wb                       # W2 hidden slab (streamed)
            + 2 * e_pad * b2b                           # b2
            + 2 * tm * e_pad * ob                       # out tile
            + (tm * e_pad * 4 if use_scratch else 0)    # f32 accumulator scratch
            + tm * th * 4                               # (tm, th) f32 GELU intermediate
            + tm * th * h_cast_b)                       # cast copy of h for second matmul


def _select_tiles(m, h_total, e_pad, block_m, block_h, xb, wb, b1b, b2b, ob,
                  use_scratch, h_cast_b, budget):
    """Pick (tm, th). Shrink th first (keeps weight traffic constant), then tm."""
    th_cands = _hidden_tile_candidates(h_total, block_h)
    tm = min(block_m, _round_up(m, 8))
    while True:
        for th in th_cands:
            if _tile_footprint(tm, th, e_pad, xb, wb, b1b, b2b, ob,
                               use_scratch, h_cast_b) <= budget:
                return tm, th
        if tm <= 128:
            return tm, th_cands[-1]   # best effort; vmem_limit is clamped to capacity
        tm = max(128, _round_up(tm // 2, 8))


# --------------------------------------------------------------------------- wrappers
def prepare_params(w1, b1, w2, b2, *, compute_dtype=None):
    """Cast (optional) + lane-pad weights ONCE — hoisted out of the per-call path."""
    e, hdim = w1.shape
    e_pad = _round_up(e, 128)
    if compute_dtype is not None:
        w1 = w1.astype(compute_dtype)
        w2 = w2.astype(compute_dtype)
    if e_pad != e:
        w1 = jnp.pad(w1, ((0, e_pad - e), (0, 0)))
        w2 = jnp.pad(w2, ((0, 0), (0, e_pad - e)))
        b2 = jnp.pad(b2, ((0, e_pad - e),))
    return w1, b1.reshape(1, hdim), w2, b2.reshape(1, e_pad)


@functools.partial(jax.jit, static_argnames=("block_m", "block_h", "compute_dtype",
                                             "approximate_gelu"))
def feedforward_prepared(x, w1p, b1_2d, w2p, b2_2d, *, block_m=512, block_h=512,
                         compute_dtype=None, approximate_gelu=False):
    """x: (B, T, E) -> (B, T, E). Weights must come from prepare_params()."""
    B, T, E = x.shape
    E_pad, Hdim = w1p.shape
    M = B * T
    out_dtype = x.dtype

    if compute_dtype is not None:
        x = x.astype(compute_dtype)
    x2d = x.reshape(M, E)

    # f32 outputs accumulate directly in the resident output block (no acc scratch).
    use_scratch = jnp.dtype(out_dtype) != jnp.dtype(jnp.float32)

    xb = jnp.dtype(x2d.dtype).itemsize
    wb = jnp.dtype(w1p.dtype).itemsize
    b1b = jnp.dtype(b1_2d.dtype).itemsize
    b2b = jnp.dtype(b2_2d.dtype).itemsize
    ob = jnp.dtype(out_dtype).itemsize
    h_cast_b = 0 if jnp.dtype(w2p.dtype) == jnp.dtype(jnp.float32) else wb

    cap = _vmem_capacity_bytes()                    # 128 MiB v5e/v6e, 64 MiB v7x
    budget = max(cap - (12 << 20), 24 << 20)        # leave headroom for compiler temps
    tm, th = _select_tiles(M, Hdim, E_pad, block_m, block_h, xb, wb, b1b, b2b, ob,
                           use_scratch, h_cast_b, budget)

    M_pad = _round_up(M, tm)
    if M_pad != M or E_pad != E:
        x2d = jnp.pad(x2d, ((0, M_pad - M), (0, E_pad - E)))

    grid = (M_pad // tm, Hdim // th)
    footprint = _tile_footprint(tm, th, E_pad, xb, wb, b1b, b2b, ob,
                                use_scratch, h_cast_b)
    vmem_limit = min(cap, max(int(footprint * 1.3) + (8 << 20), 32 << 20))

    in_specs = [
        pl.BlockSpec((tm, E_pad), lambda i, k: (i, 0)),   # x rows (resident over k)
        pl.BlockSpec((E_pad, th), lambda i, k: (0, k)),   # W1 hidden slab (streamed)
        pl.BlockSpec((1, th), lambda i, k: (0, k)),       # b1 hidden slab
        pl.BlockSpec((th, E_pad), lambda i, k: (k, 0)),   # W2 hidden slab (streamed)
        pl.BlockSpec((1, E_pad), lambda i, k: (0, 0)),    # b2
    ]
    out_spec = pl.BlockSpec((tm, E_pad), lambda i, k: (i, 0))

    if use_scratch:
        kernel = functools.partial(_ffn_kernel_scratch, approximate=approximate_gelu)
        scratch = [pltpu.VMEM((tm, E_pad), jnp.float32)]
    else:
        kernel = functools.partial(_ffn_kernel_inplace, approximate=approximate_gelu)
        scratch = []

    out2d = pl.pallas_call(
        kernel,
        out_shape=jax.ShapeDtypeStruct((M_pad, E_pad), out_dtype),
        grid_spec=pltpu.PrefetchScalarGridSpec(
            num_scalar_prefetch=0,
            grid=grid,
            in_specs=in_specs,
            out_specs=out_spec,
            scratch_shapes=scratch,
        ),
        compiler_params=pltpu.CompilerParams(
            dimension_semantics=("parallel", "arbitrary"),
            vmem_limit_bytes=vmem_limit,
        ),
    )(x2d, w1p, b1_2d, w2p, b2_2d)

    return out2d[:M, :E].reshape(B, T, E)


def feedforward(x, w1, b1, w2, b2, *, block_m=512, block_h=512, compute_dtype=None,
                approximate_gelu=False):
    """One-shot convenience: prepares (casts/pads) weights then runs the kernel.
    For repeated (inference-style) calls, run prepare_params() once and call
    feedforward_prepared() to avoid re-casting / re-padding weights in HBM each call."""
    params = prepare_params(w1, b1, w2, b2, compute_dtype=compute_dtype)
    return feedforward_prepared(x, *params, block_m=block_m, block_h=block_h,
                                compute_dtype=compute_dtype,
                                approximate_gelu=approximate_gelu)


# --------------------------------------------------------------------------- test utils
def init_params(key, embed_dim, dtype=jnp.float32):
    """Synthetic init matching nn.Linear shapes (row-major: in x out)."""
    hidden = 4 * embed_dim
    k1, k2, k3, k4 = jax.random.split(key, 4)
    lim1 = 1.0 / jnp.sqrt(embed_dim)
    lim2 = 1.0 / jnp.sqrt(hidden)
    w1 = jax.random.uniform(k1, (embed_dim, hidden), dtype, -lim1, lim1)
    b1 = jax.random.uniform(k2, (hidden,), dtype, -lim1, lim1)
    w2 = jax.random.uniform(k3, (hidden, embed_dim), dtype, -lim2, lim2)
    b2 = jax.random.uniform(k4, (embed_dim,), dtype, -lim2, lim2)
    return w1, b1, w2, b2


def _reference(x, w1, b1, w2, b2, approximate=False):
    B, T, E = x.shape
    h = x.reshape(-1, E).astype(jnp.float32) @ w1.astype(jnp.float32) + b1.astype(jnp.float32)
    if approximate:
        h = 0.5 * h * (1.0 + jnp.tanh(_SQRT_2_OVER_PI * (h + 0.044715 * h ** 3)))
    else:
        h = 0.5 * h * (1.0 + lax.erf(h / jnp.sqrt(2.0)))
    y = h @ w2.astype(jnp.float32) + b2.astype(jnp.float32)
    return y.reshape(B, T, E)


if __name__ == "__main__":
    key = jax.random.PRNGKey(0)

    # --- Test 1: tiny GPT-ish shapes (B=2, T=8, E=32 -> H=128), f32 ----------
    B, T, E = 2, 8, 32
    kx, kp, key = jax.random.split(key, 3)
    x = jax.random.normal(kx, (B, T, E), jnp.float32)
    w1, b1, w2, b2 = init_params(kp, E)
    out = jax.block_until_ready(feedforward(x, w1, b1, w2, b2))
    ref = _reference(x, w1, b1, w2, b2)
    assert out.shape == (B, T, E)
    assert jnp.allclose(out, ref, atol=1e-4, rtol=1e-4), "f32 small-shape mismatch"

    # --- Test 2: hidden-dim tiling + row padding (M=82 -> 88), f32 -----------
    B2, T2, E2 = 2, 41, 256   # H = 1024 -> streamed hidden tiles
    kx2, kp2, key = jax.random.split(key, 3)
    x2 = jax.random.normal(kx2, (B2, T2, E2), jnp.float32)
    p2 = init_params(kp2, E2)
    out2 = jax.block_until_ready(feedforward(x2, *p2))
    ref2 = _reference(x2, *p2)
    assert out2.shape == (B2, T2, E2)
    assert jnp.allclose(out2, ref2, atol=1e-3, rtol=1e-3), "f32 tiled mismatch"

    # --- Test 3: bf16 MXU path via prepared weights (f32 in/out, f32 GELU/acc) -
    pw = prepare_params(*p2, compute_dtype=jnp.bfloat16)
    out3 = jax.block_until_ready(
        feedforward_prepared(x2, *pw, compute_dtype=jnp.bfloat16))
    assert out3.dtype == x2.dtype
    assert jnp.allclose(out3.astype(jnp.float32), ref2, atol=5e-2, rtol=5e-2), "bf16 mismatch"

    # --- Test 4: bf16 activations/output (exercises the scratch-accumulator variant) ---
    x2b = x2.astype(jnp.bfloat16)
    out4 = jax.block_until_ready(feedforward_prepared(x2b, *pw, compute_dtype=jnp.bfloat16))
    assert out4.dtype == jnp.bfloat16
    assert jnp.allclose(out4.astype(jnp.float32), ref2, atol=1e-1, rtol=5e-2), "bf16-out mismatch"

    # --- Test 5: tanh-approx GELU (EUP path) vs. matching reference ----------
    out5 = jax.block_until_ready(feedforward(x2, *p2, approximate_gelu=True))
    ref5 = _reference(x2, *p2, approximate=True)
    assert jnp.allclose(out5, ref5, atol=1e-3, rtol=1e-3), "approx-GELU mismatch"

    print("KERNEL_OK")
</pallas_src>

<mosaic_0001>
module attributes {stable_mosaic.version = 11 : i64} {
  func.func @_ffn_kernel_inplace(%arg0: i32, %arg1: i32, %arg2: memref<16x128xf32, #tpu.memory_space<vmem>>, %arg3: memref<128x128xf32, #tpu.memory_space<vmem>>, %arg4: memref<1x128xf32, #tpu.memory_space<vmem>>, %arg5: memref<128x128xf32, #tpu.memory_space<vmem>>, %arg6: memref<1x128xf32, #tpu.memory_space<vmem>>, %arg7: memref<16x128xf32, #tpu.memory_space<vmem>>) attributes {dimension_semantics = [#tpu.dimension_semantics<parallel>, #tpu.dimension_semantics<arbitrary>], iteration_bounds = array<i64: 1, 1>, scalar_prefetch = 0 : i64, scratch_operands = 0 : i64, tpu.core_type = #tpu.core_type<tc>, window_params = [{transform_indices = @transform_0, window_bounds = array<i64: 16, 128>}, {transform_indices = @transform_1, window_bounds = array<i64: 128, 128>}, {transform_indices = @transform_2, window_bounds = array<i64: 1, 128>}, {transform_indices = @transform_3, window_bounds = array<i64: 128, 128>}, {pipeline_mode = #tpu.pipeline_mode<synchronous>, transform_indices = @transform_4, window_bounds = array<i64: 1, 128>}, {transform_indices = @transform_5, window_bounds = array<i64: 16, 128>}]} {
    %c0_i32 = arith.constant 0 : i32
    %0 = arith.cmpi eq, %arg1, %c0_i32 : i32
    %1 = arith.extui %0 : i1 to i32
    %c0_i32_0 = arith.constant 0 : i32
    %2 = arith.cmpi ne, %1, %c0_i32_0 : i32
    scf.if %2 {
      %c0_16 = arith.constant 0 : index
      %c0_17 = arith.constant 0 : index
      %22 = vector.load %arg6[%c0_16, %c0_17] : memref<1x128xf32, #tpu.memory_space<vmem>>, vector<1x128xf32>
      %23 = vector.shape_cast %22 : vector<1x128xf32> to vector<1x128xf32>
      %24 = vector.broadcast %23 : vector<1x128xf32> to vector<16x128xf32>
      %c0_18 = arith.constant 0 : index
      %c0_19 = arith.constant 0 : index
      %25 = vector.load %arg7[%c0_18, %c0_19] : memref<16x128xf32, #tpu.memory_space<vmem>>, vector<16x128xf32>
      tpu.vector_store %arg7[%c0_18, %c0_19], %24 {strides = array<i32>} : memref<16x128xf32, #tpu.memory_space<vmem>>, vector<16x128xf32>,
    } else {
    }
    %c0 = arith.constant 0 : index
    %c0_1 = arith.constant 0 : index
    %3 = vector.load %arg2[%c0, %c0_1] : memref<16x128xf32, #tpu.memory_space<vmem>>, vector<16x128xf32>
    %c0_2 = arith.constant 0 : index
    %c0_3 = arith.constant 0 : index
    %4 = vector.load %arg3[%c0_2, %c0_3] : memref<128x128xf32, #tpu.memory_space<vmem>>, vector<128x128xf32>
    %cst = arith.constant dense<0.000000e+00> : vector<16x128xf32>
    %5 = tpu.matmul %3, %4, %cst {dimension_numbers = #tpu.dot_dimension_numbers<[1], [0], [0], [1], [0, 0, 1, 1], [], []>} : vector<16x128xf32>, vector<128x128xf32>, vector<16x128xf32> -> vector<16x128xf32>
    %c0_4 = arith.constant 0 : index
    %c0_5 = arith.constant 0 : index
    %6 = vector.load %arg4[%c0_4, %c0_5] : memref<1x128xf32, #tpu.memory_space<vmem>>, vector<1x128xf32>
    %7 = vector.broadcast %6 : vector<1x128xf32> to vector<16x128xf32>
    %8 = arith.addf %5, %7 : vector<16x128xf32>
    %cst_6 = arith.constant 5.000000e-01 : f32
    %9 = vector.broadcast %cst_6 : f32 to vector<16x128xf32>
    %10 = arith.mulf %9, %8 : vector<16x128xf32>
    %cst_7 = arith.constant 0.707106769 : f32
    %11 = vector.broadcast %cst_7 : f32 to vector<16x128xf32>
    %12 = arith.mulf %8, %11 : vector<16x128xf32>
    %13 = math.erf %12 : vector<16x128xf32>
    %cst_8 = arith.constant 1.000000e+00 : f32
    %14 = vector.broadcast %cst_8 : f32 to vector<16x128xf32>
    %15 = arith.addf %14, %13 : vector<16x128xf32>
    %16 = arith.mulf %10, %15 : vector<16x128xf32>
    %c0_9 = arith.constant 0 : index
    %c0_10 = arith.constant 0 : index
    %17 = vector.load %arg7[%c0_9, %c0_10] : memref<16x128xf32, #tpu.memory_space<vmem>>, vector<16x128xf32>
    %c0_11 = arith.constant 0 : index
    %c0_12 = arith.constant 0 : index
    %18 = vector.load %arg5[%c0_11, %c0_12] : memref<128x128xf32, #tpu.memory_space<vmem>>, vector<128x128xf32>
    %cst_13 = arith.constant dense<0.000000e+00> : vector<16x128xf32>
    %19 = tpu.matmul %16, %18, %cst_13 {dimension_numbers = #tpu.dot_dimension_numbers<[1], [0], [0], [1], [0, 0, 1, 1], [], []>} : vector<16x128xf32>, vector<128x128xf32>, vector<16x128xf32> -> vector<16x128xf32>
    %20 = arith.addf %17, %19 : vector<16x128xf32>
    %c0_14 = arith.constant 0 : index
    %c0_15 = arith.constant 0 : index
    %21 = vector.load %arg7[%c0_14, %c0_15] : memref<16x128xf32, #tpu.memory_space<vmem>>, vector<16x128xf32>
    tpu.vector_store %arg7[%c0_14, %c0_15], %20 {strides = array<i32>} : memref<16x128xf32, #tpu.memory_space<vmem>>, vector<16x128xf32>,
    return
  }
  func.func @transform_0(%arg0: i32, %arg1: i32) -> (i32, i32) {
    %c0_i32 = arith.constant 0 : i32
    %c0_i32_0 = arith.constant 0 : i32
    return %arg0, %c0_i32 : i32, i32
  }
  func.func @transform_1(%arg0: i32, %arg1: i32) -> (i32, i32) {
    %c0_i32 = arith.constant 0 : i32
    %c0_i32_0 = arith.constant 0 : i32
    return %c0_i32, %arg1 : i32, i32
  }
  func.func @transform_2(%arg0: i32, %arg1: i32) -> (i32, i32) {
    %c0_i32 = arith.constant 0 : i32
    %c0_i32_0 = arith.constant 0 : i32
    return %c0_i32, %arg1 : i32, i32
  }
  func.func @transform_3(%arg0: i32, %arg1: i32) -> (i32, i32) {
    %c0_i32 = arith.constant 0 : i32
    %c0_i32_0 = arith.constant 0 : i32
    return %arg1, %c0_i32 : i32, i32
  }
  func.func @transform_4(%arg0: i32, %arg1: i32) -> (i32, i32) {
    %c0_i32 = arith.constant 0 : i32
    %c0_i32_0 = arith.constant 0 : i32
    %c0_i32_1 = arith.constant 0 : i32
    return %c0_i32, %c0_i32_0 : i32, i32
  }
  func.func @transform_5(%arg0: i32, %arg1: i32) -> (i32, i32) {
    %c0_i32 = arith.constant 0 : i32
    %c0_i32_0 = arith.constant 0 : i32
    return %arg0, %c0_i32 : i32, i32
  }
}

</mosaic_0001>

<llo_original>
// kernel: feedforward_prepared.1
$region0: #{feedforward_prepared.1}
  #allocation0 [shape = 'u32[]', space=smem, size = 0x4, offset = 0x4, fixed_abs, tag = 'smem constant byte address 0x4 - core index']
  #allocation1 [shape = 'u32[144,128]{1,0:T(1,128)}', space=vmem, size = 0x12000, scoped, tag = 'internal scratch']
  %s0 = inlined_call_operand.vmem [shape: f32[16,128], index: 0, kind: input, shape index: {}]
  %s1 = inlined_call_operand.hbm [shape: f32[128,128], index: 1, kind: input, shape index: {}]
  %s2 = inlined_call_operand.vmem [shape: f32[1,128], index: 2, kind: input, shape index: {}]
  %s3 = inlined_call_operand.hbm [shape: f32[128,128], index: 3, kind: input, shape index: {}]
  %s4 = inlined_call_operand.vmem [shape: f32[1,128], index: 4, kind: input, shape index: {}]
  %s5 = inlined_call_operand.vmem [shape: f32[16,128], index: 5, kind: output, shape index: {}]
  %s6 = sld [smem:[#allocation0]]
  $region42: #{feedforward_prepared.1} parent=0
    _
  %s8 = ssub.s32 1, %s6
  %s9 = scalar_select 0, %s8, %s6
  $region1: #{feedforward_prepared.1} parent=0
    #allocation2 [shape = 'u8[65536]{0}', space=vmem, size = 0x10000, scoped, tag = 'input window, operand 1, single buffered']
    #allocation3 [shape = 's32[1]{0}', space=sflag, size = 0x4, scoped, tag = 'scoped memory for feedforward_prepared.1']
    #allocation4 [shape = 'u8[65536]{0}', space=vmem, size = 0x10000, scoped, tag = 'input window, operand 3, single buffered']
    #allocation5 [shape = 's32[1]{0}', space=sflag, size = 0x4, scoped, tag = 'scoped memory for feedforward_prepared.1']
    %10 = vsyncpa [#allocation3], 0
    %11 = vsyncpa [#allocation5], 0
    // Predicated region
    $region2: #{feedforward_prepared.1} parent=1 // pred_check
      _
    $region3: #{feedforward_prepared.1} parent=1 // pred_check_branch
      %13 = sbr.rel (0) target = $region5
    $region4: #{feedforward_prepared.1} parent=1 // pred_region
      _
    $region5: #{feedforward_prepared.1} parent=1 // pred_fallthru
      _
    // Predicated region
    $region6: #{feedforward_prepared.1} parent=1 // pred_check
      _
    $region7: #{feedforward_prepared.1} parent=1 // pred_check_branch
      %15 = sbr.rel (0) target = $region9
    $region8: #{feedforward_prepared.1} parent=1 // pred_region
      %s17 = ssub.s32 2048, 2048
      %18 = vsyncadd [#allocation3], %s17
      %s19 = sshll.u32 [#allocation2], 4
      %s20 = int_to_ptr.vmem [resolvable:$true] %s19
      %25 = dma.hbm_to_vmem [thread:$0]  %s1, 2048, %s20, [#allocation3], 128, 128, 8
    $region9: #{feedforward_prepared.1} parent=1 // pred_fallthru
      _
    // Predicated region
    $region10: #{feedforward_prepared.1} parent=1 // pred_check
      _
    $region11: #{feedforward_prepared.1} parent=1 // pred_check_branch
      %27 = sbr.rel (0) target = $region13
    $region12: #{feedforward_prepared.1} parent=1 // pred_region
      _
    $region13: #{feedforward_prepared.1} parent=1 // pred_fallthru
      _
    // Predicated region
    $region14: #{feedforward_prepared.1} parent=1 // pred_check
      _
    $region15: #{feedforward_prepared.1} parent=1 // pred_check_branch
      %29 = sbr.rel (0) target = $region17
    $region16: #{feedforward_prepared.1} parent=1 // pred_region
      %s31 = ssub.s32 2048, 2048
      %32 = vsyncadd [#allocation5], %s31
      %s33 = sshll.u32 [#allocation4], 4
      %s34 = int_to_ptr.vmem [resolvable:$true] %s33
      %39 = dma.hbm_to_vmem [thread:$0]  %s3, 2048, %s34, [#allocation5], 128, 128, 8
    $region17: #{feedforward_prepared.1} parent=1 // pred_fallthru
      _
    // Predicated region
    $region18: #{feedforward_prepared.1} parent=1 // pred_check
      _
    $region19: #{feedforward_prepared.1} parent=1 // pred_check_branch
      %41 = sbr.rel (0) target = $region21
    $region20: #{feedforward_prepared.1} parent=1 // pred_region
      _
    $region21: #{feedforward_prepared.1} parent=1 // pred_fallthru
      _
    // Predicated region
    $region22: #{feedforward_prepared.1} parent=1 // pred_check
      _
    $region23: #{feedforward_prepared.1} parent=1 // pred_check_branch
      %43 = sbr.rel (0) target = $region25
    $region24: #{feedforward_prepared.1} parent=1 // pred_region
      %44 = dma.done [#allocation3], 2048
    $region25: #{feedforward_prepared.1} parent=1 // pred_fallthru
      _
    // Predicated region
    $region26: #{feedforward_prepared.1} parent=1 // pred_check
      _
    $region27: #{feedforward_prepared.1} parent=1 // pred_check_branch
      %46 = sbr.rel (0) target = $region29
    $region28: #{feedforward_prepared.1} parent=1 // pred_region
      %47 = dma.done [#allocation5], 2048
    $region29: #{feedforward_prepared.1} parent=1 // pred_fallthru
      _
    %p48 = scmp.eq.s32.totalorder 0, 0
    // Predicated region
    $region30: #{feedforward_prepared.1} parent=1 // pred_check
      %p49 = pneg %p48
    $region31: #{feedforward_prepared.1} parent=1 // pred_check_branch
      %51 = sbr.rel (%p49) target = $region33
    $region32: #{feedforward_prepared.1} parent=1 // pred_region
      %v52 = vld [vmem:[%s4] sm:$0x1]
      %v54 = vlaneseq
      %v55 = vshrl.u32 %v54, 7
      %v56 = vsub.s32 0, %v55
      %v57 = vrot.slane %v52, %v56
      %59 = vst [vmem:[%s5] sm:$0xff] %v57
      %60 = vst [vmem:[%s5 + $0x8] sm:$0xff] %v57
    $region33: #{feedforward_prepared.1} parent=1 // pred_fallthru
      _
    %v61 = vld [vmem:[%s0] sm:$0xff]
    %v62 = vld [vmem:[%s0 + $0x8] sm:$0xff]
    %v63 = vld [vmem:[#allocation2] sm:$0xff]
    %v64 = vld [vmem:[#allocation2 + $0x8] sm:$0xff]
    %v65 = vld [vmem:[#allocation2 + $0x10] sm:$0xff]
    %v66 = vld [vmem:[#allocation2 + $0x18] sm:$0xff]
    %v67 = vld [vmem:[#allocation2 + $0x20] sm:$0xff]
    %v68 = vld [vmem:[#allocation2 + $0x28] sm:$0xff]
    %v69 = vld [vmem:[#allocation2 + $0x30] sm:$0xff]
    %v70 = vld [vmem:[#allocation2 + $0x38] sm:$0xff]
    %v71 = vld [vmem:[#allocation2 + $0x40] sm:$0xff]
    %v72 = vld [vmem:[#allocation2 + $0x48] sm:$0xff]
    %v73 = vld [vmem:[#allocation2 + $0x50] sm:$0xff]
    %v74 = vld [vmem:[#allocation2 + $0x58] sm:$0xff]
    %v75 = vld [vmem:[#allocation2 + $0x60] sm:$0xff]
    %v76 = vld [vmem:[#allocation2 + $0x68] sm:$0xff]
    %v77 = vld [vmem:[#allocation2 + $0x70] sm:$0xff]
    %v78 = vld [vmem:[#allocation2 + $0x78] sm:$0xff]
    %v79 = vld [vmem:[%s2] sm:$0x1]
    %v81 = vlaneseq
    %v82 = vshrl.u32 %v81, 7
    %v83 = vsub.s32 0, %v82
    %v84 = vrot.slane %v79, %v83
    %86 = vmatprep.subr.mxu0 0.0
    %87 = vmatpush1.msra.mxu0 %v63
    %88 = vmatprep.subr.mxu0 0.0
    %89 = vmatpush1.msra.mxu0 %v64
    %90 = vmatprep.subr.mxu0 0.0
    %91 = vmatpush1.msra.mxu0 %v65
    %92 = vmatprep.subr.mxu0 0.0
    %93 = vmatpush1.msra.mxu0 %v66
    %94 = vmatprep.subr.mxu0 0.0
    %95 = vmatpush1.msra.mxu0 %v67
    %96 = vmatprep.subr.mxu0 0.0
    %97 = vmatpush1.msra.mxu0 %v68
    %98 = vmatprep.subr.mxu0 0.0
    %99 = vmatpush1.msra.mxu0 %v69
    %100 = vmatprep.subr.mxu0 0.0
    %101 = vmatpush1.msra.mxu0 %v70
    %102 = vmatprep.subr.mxu0 0.0
    %103 = vmatpush1.msra.mxu0 %v71
    %104 = vmatprep.subr.mxu0 0.0
    %105 = vmatpush1.msra.mxu0 %v72
    %106 = vmatprep.subr.mxu0 0.0
    %107 = vmatpush1.msra.mxu0 %v73
    %108 = vmatprep.subr.mxu0 0.0
    %109 = vmatpush1.msra.mxu0 %v74
    %110 = vmatprep.subr.mxu0 0.0
    %111 = vmatpush1.msra.mxu0 %v75
    %112 = vmatprep.subr.mxu0 0.0
    %113 = vmatpush1.msra.mxu0 %v76
    %114 = vmatprep.subr.mxu0 0.0
    %115 = vmatpush1.msra.mxu0 %v77
    %116 = vmatprep.subr.mxu0 0.0
    %117 = vmatpush1.msra.mxu0 %v78
    %118 = vmatprep.subr.mxu0 0.0
    %119 = vmatpush1.msra.mxu0 0.0
    %120 = vmatprep.subr.mxu0 0.0
    %121 = vmatpush1.msra.mxu0 0.0
    %122 = vmatprep.subr.mxu0 0.0
    %123 = vmatpush1.msra.mxu0 0.0
    %124 = vmatprep.subr.mxu0 0.0
    %125 = vmatpush1.msra.mxu0 0.0
    %126 = vmatprep.subr.mxu0 0.0
    %127 = vmatpush1.msra.mxu0 0.0
    %128 = vmatprep.subr.mxu0 0.0
    %129 = vmatpush1.msra.mxu0 0.0
    %130 = vmatprep.subr.mxu0 0.0
    %131 = vmatpush1.msra.mxu0 0.0
    %132 = vmatprep.subr.mxu0 0.0
    %133 = vmatpush1.msra.mxu0 0.0
    %134 = vmatprep.subr.mxu0 0.0
    %135 = vmatpush1.msra.mxu0 0.0
    %136 = vmatprep.subr.mxu0 0.0
    %137 = vmatpush1.msra.mxu0 0.0
    %138 = vmatprep.subr.mxu0 0.0
    %139 = vmatpush1.msra.mxu0 0.0
    %140 = vmatprep.subr.mxu0 0.0
    %141 = vmatpush1.msra.mxu0 0.0
    %142 = vmatprep.subr.mxu0 0.0
    %143 = vmatpush1.msra.mxu0 0.0
    %144 = vmatprep.subr.mxu0 0.0
    %145 = vmatpush1.msra.mxu0 0.0
    %146 = vmatprep.subr.mxu0 0.0
    %147 = vmatpush1.msra.mxu0 0.0
    %148 = vmatprep.subr.mxu0 0.0
    %149 = vmatpush1.msra.mxu0 0.0
    %150 = vmatprep.mubr.f32.mxu0 0.0
    %151 = vmatmul.mubr.f32.gmra.mrb[0].mxu0 %v61
    %v152 = vpop.f32.mrb[0].mxu0
    %v153 = vadd.f32 %v84, %v152
    %v154 = vpop.f32.mrb[0].mxu0
    %155 = vmatprep.mubr.f32.mxu0 0.0
    %156 = vmatmul.mubr.f32.gmra.mrb[0].mxu0 %v62
    %v157 = vpop.f32.mrb[0].mxu0
    %v158 = vadd.f32 %v84, %v157
    %v159 = vpop.f32.mrb[0].mxu0
    %160 = vdwg.mxu0
    %v161 = vmul.f32 %v153, 0.5
    %v162 = vmul.f32 %v158, 0.5
    %v163 = vmul.f32 %v153, 0.70710677
    %v164 = vmul.f32 %v158, 0.70710677
    %v165 = verf.f32.pop %v163
    %v166 = verf.f32.pop %v164
    %v167 = vadd.f32 %v165, 1.0
    %v168 = vadd.f32 %v166, 1.0
    %v169 = vmul.f32 %v161, %v167
    %v170 = vmul.f32 %v162, %v168
    %v171 = vld [vmem:[%s5] sm:$0xff]
    %v172 = vld [vmem:[%s5 + $0x8] sm:$0xff]
    %v173 = vld [vmem:[#allocation4] sm:$0xff]
    %v174 = vld [vmem:[#allocation4 + $0x8] sm:$0xff]
    %v175 = vld [vmem:[#allocation4 + $0x10] sm:$0xff]
    %v176 = vld [vmem:[#allocation4 + $0x18] sm:$0xff]
    %v177 = vld [vmem:[#allocation4 + $0x20] sm:$0xff]
    %v178 = vld [vmem:[#allocation4 + $0x28] sm:$0xff]
    %v179 = vld [vmem:[#allocation4 + $0x30] sm:$0xff]
    %v180 = vld [vmem:[#allocation4 + $0x38] sm:$0xff]
    %v181 = vld [vmem:[#allocation4 + $0x40] sm:$0xff]
    %v182 = vld [vmem:[#allocation4 + $0x48] sm:$0xff]
    %v183 = vld [vmem:[#allocation4 + $0x50] sm:$0xff]
    %v184 = vld [vmem:[#allocation4 + $0x58] sm:$0xff]
    %v185 = vld [vmem:[#allocation4 + $0x60] sm:$0xff]
    %v186 = vld [vmem:[#allocation4 + $0x68] sm:$0xff]
    %v187 = vld [vmem:[#allocation4 + $0x70] sm:$0xff]
    %v188 = vld [vmem:[#allocation4 + $0x78] sm:$0xff]
    %189 = vmatprep.subr.mxu0 0.0
    %190 = vmatpush1.msra.mxu0 %v173
    %191 = vmatprep.subr.mxu0 0.0
    %192 = vmatpush1.msra.mxu0 %v174
    %193 = vmatprep.subr.mxu0 0.0
    %194 = vmatpush1.msra.mxu0 %v175
    %195 = vmatprep.subr.mxu0 0.0
    %196 = vmatpush1.msra.mxu0 %v176
    %197 = vmatprep.subr.mxu0 0.0
    %198 = vmatpush1.msra.mxu0 %v177
    %199 = vmatprep.subr.mxu0 0.0
    %200 = vmatpush1.msra.mxu0 %v178
    %201 = vmatprep.subr.mxu0 0.0
    %202 = vmatpush1.msra.mxu0 %v179
    %203 = vmatprep.subr.mxu0 0.0
    %204 = vmatpush1.msra.mxu0 %v180
    %205 = vmatprep.subr.mxu0 0.0
    %206 = vmatpush1.msra.mxu0 %v181
    %207 = vmatprep.subr.mxu0 0.0
    %208 = vmatpush1.msra.mxu0 %v182
    %209 = vmatprep.subr.mxu0 0.0
    %210 = vmatpush1.msra.mxu0 %v183
    %211 = vmatprep.subr.mxu0 0.0
    %212 = vmatpush1.msra.mxu0 %v184
    %213 = vmatprep.subr.mxu0 0.0
    %214 = vmatpush1.msra.mxu0 %v185
    %215 = vmatprep.subr.mxu0 0.0
    %216 = vmatpush1.msra.mxu0 %v186
    %217 = vmatprep.subr.mxu0 0.0
    %218 = vmatpush1.msra.mxu0 %v187
    %219 = vmatprep.subr.mxu0 0.0
    %220 = vmatpush1.msra.mxu0 %v188
    %221 = vmatprep.subr.mxu0 0.0
    %222 = vmatpush1.msra.mxu0 0.0
    %223 = vmatprep.subr.mxu0 0.0
    %224 = vmatpush1.msra.mxu0 0.0
    %225 = vmatprep.subr.mxu0 0.0
    %226 = vmatpush1.msra.mxu0 0.0
    %227 = vmatprep.subr.mxu0 0.0
    %228 = vmatpush1.msra.mxu0 0.0
    %229 = vmatprep.subr.mxu0 0.0
    %230 = vmatpush1.msra.mxu0 0.0
    %231 = vmatprep.subr.mxu0 0.0
    %232 = vmatpush1.msra.mxu0 0.0
    %233 = vmatprep.subr.mxu0 0.0
    %234 = vmatpush1.msra.mxu0 0.0
    %235 = vmatprep.subr.mxu0 0.0
    %236 = vmatpush1.msra.mxu0 0.0
    %237 = vmatprep.subr.mxu0 0.0
    %238 = vmatpush1.msra.mxu0 0.0
    %239 = vmatprep.subr.mxu0 0.0
    %240 = vmatpush1.msra.mxu0 0.0
    %241 = vmatprep.subr.mxu0 0.0
    %242 = vmatpush1.msra.mxu0 0.0
    %243 = vmatprep.subr.mxu0 0.0
    %244 = vmatpush1.msra.mxu0 0.0
    %245 = vmatprep.subr.mxu0 0.0
    %246 = vmatpush1.msra.mxu0 0.0
    %247 = vmatprep.subr.mxu0 0.0
    %248 = vmatpush1.msra.mxu0 0.0
    %249 = vmatprep.subr.mxu0 0.0
    %250 = vmatpush1.msra.mxu0 0.0
    %251 = vmatprep.subr.mxu0 0.0
    %252 = vmatpush1.msra.mxu0 0.0
    %253 = vmatprep.mubr.f32.mxu0 0.0
    %254 = vmatmul.mubr.f32.gmra.mrb[0].mxu0 %v169
    %v255 = vpop.f32.mrb[0].mxu0
    %v256 = vadd.f32 0.0, %v255
    %v257 = vpop.f32.mrb[0].mxu0
    %258 = vmatprep.mubr.f32.mxu0 0.0
    %259 = vmatmul.mubr.f32.gmra.mrb[0].mxu0 %v170
    %v260 = vpop.f32.mrb[0].mxu0
    %v261 = vadd.f32 0.0, %v260
    %v262 = vpop.f32.mrb[0].mxu0
    %263 = vdwg.mxu0
    %v264 = vadd.f32 %v171, %v256
    %v265 = vadd.f32 %v172, %v261
    %266 = vst [vmem:[%s5] sm:$0xff] %v264
    %267 = vst [vmem:[%s5 + $0x8] sm:$0xff] %v265
    // Predicated region
    $region34: #{feedforward_prepared.1} parent=1 // pred_check
      _
    $region35: #{feedforward_prepared.1} parent=1 // pred_check_branch
      %269 = sbr.rel (0) target = $region37
    $region36: #{feedforward_prepared.1} parent=1 // pred_region
      _
    $region37: #{feedforward_prepared.1} parent=1 // pred_fallthru
      _
    // Predicated region
    $region38: #{feedforward_prepared.1} parent=1 // pred_check
      _
    $region39: #{feedforward_prepared.1} parent=1 // pred_check_branch
      %271 = sbr.rel (0) target = $region41
    $region40: #{feedforward_prepared.1} parent=1 // pred_region
      _
    $region41: #{feedforward_prepared.1} parent=1 // pred_fallthru
      _
    %272 = vsyncpa [#allocation3], 1
    %273 = vsyncpa [#allocation5], 1

</llo_original>
